<compile_context>
chip_gen: v7x
topology: tpu7x:2x2x1
jax: 0.10.0
libtpu: 0.0.40
codegen_flags: <defaults>
</compile_context>

<pallas_src>
import functools

import jax
import jax.numpy as jnp
from jax.experimental import pallas as pl
from jax.experimental.pallas import tpu as pltpu

EPS = 1e-8


def _make_kernel(n_total, tile_n, c):
    def kernel(x_ref, y_ref, w_ref, o_ref):
        x = x_ref[...]            # (tile_n, C) f32 probabilities
        y = y_ref[...]            # (tile_n, 1) int32 labels
        w = w_ref[...]            # (tile_n, 1) f32 weights

        # Gather x[i, y[i]] via a one-hot mask (no per-row dynamic gather on TPU).
        col = jax.lax.broadcasted_iota(jnp.int32, (tile_n, c), 1)
        onehot = (col == y).astype(x.dtype)                    # (tile_n, C)
        picked = jnp.sum(x * onehot, axis=-1, keepdims=True)   # (tile_n, 1)

        # clamp(x, eps, 1-eps) commutes with selecting one element (x >= 0),
        # so clamp only the picked value: removes 2 VPU ops per (tile_n, C) elem.
        picked = jnp.clip(picked, EPS, 1.0 - EPS)

        # Mask rows past the true N (ragged last tile); garbage rows -> 0.
        row = (jax.lax.broadcasted_iota(jnp.int32, (tile_n, 1), 0)
               + pl.program_id(0) * tile_n)
        loss = jnp.where(row < n_total, -jnp.log(picked) * w, 0.0)

        o_ref[...] = loss         # per-row weighted NLL, (tile_n, 1)

    return kernel


def _pick_tile_n(c, budget_bytes):
    # Per row of a block: x takes 4*C bytes; the (tile_n, 1) y / w / out blocks
    # are lane-padded to 128 lanes in VMEM (4*128 bytes each).  Double-buffered.
    per_row_bytes = 4 * c + 3 * (4 * 128)
    tile_n = budget_bytes // (2 * per_row_bytes)
    return max(8, (tile_n // 8) * 8)


def llpfc_loss_val(x, y, w, *, tile_n=None, vmem_budget_bytes=8 << 20):
    """x: (N, C) f32 simplex rows; y: (N,) int; w: (N,) f32 -> scalar f32."""
    n, c = x.shape
    x = x.astype(jnp.float32)
    y2 = y.astype(jnp.int32).reshape(n, 1)
    w2 = w.astype(jnp.float32).reshape(n, 1)

    if tile_n is None:
        # ~8 MiB of double-buffered blocks: well under the default scoped VMEM
        # on every generation (16 MiB v5e, 32 MiB v6e/v7x) and big enough
        # (>=1-4 MiB per x block) to sit near the HBM roofline.
        tile_n = _pick_tile_n(c, vmem_budget_bytes)

    if tile_n >= n:
        # Small problem: single block, block shape == full array (always legal),
        # no pipeline / per-step overhead.
        tile_n = n
        grid = (1,)
    else:
        tile_n = max(8, (tile_n // 8) * 8)     # (8, 128) block constraint
        grid = (pl.cdiv(n, tile_n),)           # ragged last tile handled in-kernel

    block_bytes = tile_n * c * 4 + 3 * tile_n * 128 * 4
    vmem_limit = int(min(48 << 20, max(16 << 20, 2 * block_bytes + (2 << 20))))

    out = pl.pallas_call(
        _make_kernel(n, tile_n, c),
        out_shape=jax.ShapeDtypeStruct((n, 1), jnp.float32),
        grid_spec=pltpu.PrefetchScalarGridSpec(
            num_scalar_prefetch=0,
            grid=grid,
            in_specs=[
                pl.BlockSpec((tile_n, c), lambda i: (i, 0)),
                pl.BlockSpec((tile_n, 1), lambda i: (i, 0)),
                pl.BlockSpec((tile_n, 1), lambda i: (i, 0)),
            ],
            out_specs=pl.BlockSpec((tile_n, 1), lambda i: (i, 0)),
        ),
        compiler_params=pltpu.CompilerParams(
            dimension_semantics=("parallel",),   # independent row tiles (v7x 2-TC)
            vmem_limit_bytes=vmem_limit,
        ),
        cost_estimate=pl.CostEstimate(
            flops=3 * n * c,
            transcendentals=n,
            bytes_accessed=4 * n * c + 12 * n,
        ),
    )(x, y2, w2)

    # Final reduce in f32 in the wrapper (accumulation order differs slightly
    # from a serial accumulator; tolerance ~1e-5).
    return jnp.sum(out)


def _reference(x, y, w):
    xc = jnp.clip(x.astype(jnp.float32), EPS, 1.0 - EPS)
    picked = jnp.take_along_axis(xc, y[:, None].astype(jnp.int32), axis=1)[:, 0]
    return jnp.sum(-jnp.log(picked) * w.astype(jnp.float32))


def _make_inputs(key, n, c):
    k1, k2, k3 = jax.random.split(key, 3)
    logits = jax.random.normal(k1, (n, c), dtype=jnp.float32)
    x = jax.nn.softmax(logits, axis=-1)            # rows on the simplex
    y = jax.random.randint(k2, (n,), 0, c, dtype=jnp.int32)
    w = jax.random.uniform(k3, (n,), dtype=jnp.float32)
    return x, y, w


if __name__ == "__main__":
    key = jax.random.PRNGKey(0)
    k_a, k_b, k_c = jax.random.split(key, 3)

    # 1) Small problem -> single-block path (no grid overhead).
    x, y, w = _make_inputs(k_a, 16, 32)
    loss = jax.block_until_ready(llpfc_loss_val(x, y, w))
    ref = _reference(x, y, w)
    assert jnp.allclose(loss, ref, rtol=1e-5, atol=1e-5), (loss, ref)

    # 2) Multi-tile path (grid of parallel row tiles).
    x, y, w = _make_inputs(k_b, 64, 32)
    loss = jax.block_until_ready(llpfc_loss_val(x, y, w, tile_n=16))
    ref = _reference(x, y, w)
    assert jnp.allclose(loss, ref, rtol=1e-5, atol=1e-5), (loss, ref)

    # 3) Ragged last tile (N not a multiple of tile_n) -> in-kernel row mask.
    x, y, w = _make_inputs(k_c, 40, 32)
    loss = jax.block_until_ready(llpfc_loss_val(x, y, w, tile_n=16))
    ref = _reference(x, y, w)
    assert jnp.allclose(loss, ref, rtol=1e-5, atol=1e-5), (loss, ref)

    print("KERNEL_OK")
</pallas_src>

<mosaic_0001>
module attributes {stable_mosaic.version = 11 : i64} {
  func.func @kernel(%arg0: i32, %arg1: memref<16x32xf32, #tpu.memory_space<vmem>>, %arg2: memref<16x1xi32, #tpu.memory_space<vmem>>, %arg3: memref<16x1xf32, #tpu.memory_space<vmem>>, %arg4: memref<16x1xf32, #tpu.memory_space<vmem>>) attributes {dimension_semantics = [#tpu.dimension_semantics<parallel>], iteration_bounds = array<i64: 1>, scalar_prefetch = 0 : i64, scratch_operands = 0 : i64, tpu.core_type = #tpu.core_type<tc>, window_params = [{transform_indices = @transform_0, window_bounds = array<i64: 16, 32>}, {transform_indices = @transform_1, window_bounds = array<i64: 16, 1>}, {transform_indices = @transform_2, window_bounds = array<i64: 16, 1>}, {transform_indices = @transform_3, window_bounds = array<i64: 16, 1>}]} {
    %c0 = arith.constant 0 : index
    %c0_0 = arith.constant 0 : index
    %0 = vector.load %arg1[%c0, %c0_0] : memref<16x32xf32, #tpu.memory_space<vmem>>, vector<16x32xf32>
    %c0_1 = arith.constant 0 : index
    %c0_2 = arith.constant 0 : index
    %1 = vector.load %arg2[%c0_1, %c0_2] : memref<16x1xi32, #tpu.memory_space<vmem>>, vector<16x1xi32>
    %c0_3 = arith.constant 0 : index
    %c0_4 = arith.constant 0 : index
    %2 = vector.load %arg3[%c0_3, %c0_4] : memref<16x1xf32, #tpu.memory_space<vmem>>, vector<16x1xf32>
    %3 = tpu.iota {dimensions = array<i32: 1>} : vector<16x32xi32>
    %4 = vector.broadcast %1 : vector<16x1xi32> to vector<16x32xi32>
    %5 = arith.cmpi eq, %3, %4 : vector<16x32xi32>
    %6 = arith.extui %5 : vector<16x32xi1> to vector<16x32xi32>
    %7 = arith.sitofp %6 : vector<16x32xi32> to vector<16x32xf32>
    %8 = arith.mulf %0, %7 : vector<16x32xf32>
    %cst = arith.constant dense<0.000000e+00> : vector<16xf32>
    %9 = vector.multi_reduction <add>, %8, %cst [1] : vector<16x32xf32> to vector<16xf32>
    %10 = vector.shape_cast %9 : vector<16xf32> to vector<16x1xf32>
    %cst_5 = arith.constant 9.99999993E-9 : f32
    %cst_6 = arith.constant 1.000000e+00 : f32
    %11 = vector.broadcast %cst_5 : f32 to vector<16x1xf32>
    %12 = arith.maximumf %11, %10 : vector<16x1xf32>
    %13 = vector.broadcast %cst_6 : f32 to vector<16x1xf32>
    %14 = arith.minimumf %13, %12 : vector<16x1xf32>
    %15 = tpu.iota {dimensions = array<i32: 0>} : vector<16x1xi32>
    %c16_i32 = arith.constant 16 : i32
    %16 = arith.muli %arg0, %c16_i32 : i32
    %17 = vector.broadcast %16 : i32 to vector<16x1xi32>
    %18 = arith.addi %15, %17 : vector<16x1xi32>
    %c16_i32_7 = arith.constant 16 : i32
    %19 = vector.broadcast %c16_i32_7 : i32 to vector<16x1xi32>
    %20 = arith.cmpi slt, %18, %19 : vector<16x1xi32>
    %21 = math.log %14 : vector<16x1xf32>
    %cst_8 = arith.constant 0.000000e+00 : f32
    %22 = vector.broadcast %cst_8 : f32 to vector<16x1xf32>
    %23 = arith.subf %22, %21 : vector<16x1xf32>
    %24 = arith.mulf %23, %2 : vector<16x1xf32>
    %cst_9 = arith.constant 0.000000e+00 : f32
    %25 = vector.broadcast %cst_9 : f32 to vector<16x1xf32>
    %26 = arith.select %20, %24, %25 : vector<16x1xi1>, vector<16x1xf32>
    %c0_10 = arith.constant 0 : index
    %c0_11 = arith.constant 0 : index
    %27 = vector.load %arg4[%c0_10, %c0_11] : memref<16x1xf32, #tpu.memory_space<vmem>>, vector<16x1xf32>
    tpu.vector_store %arg4[%c0_10, %c0_11], %26 {strides = array<i32>} : memref<16x1xf32, #tpu.memory_space<vmem>>, vector<16x1xf32>,
    return
  }
  func.func @transform_0(%arg0: i32) -> (i32, i32) {
    %c0_i32 = arith.constant 0 : i32
    %c0_i32_0 = arith.constant 0 : i32
    return %arg0, %c0_i32 : i32, i32
  }
  func.func @transform_1(%arg0: i32) -> (i32, i32) {
    %c0_i32 = arith.constant 0 : i32
    %c0_i32_0 = arith.constant 0 : i32
    return %arg0, %c0_i32 : i32, i32
  }
  func.func @transform_2(%arg0: i32) -> (i32, i32) {
    %c0_i32 = arith.constant 0 : i32
    %c0_i32_0 = arith.constant 0 : i32
    return %arg0, %c0_i32 : i32, i32
  }
  func.func @transform_3(%arg0: i32) -> (i32, i32) {
    %c0_i32 = arith.constant 0 : i32
    %c0_i32_0 = arith.constant 0 : i32
    return %arg0, %c0_i32 : i32, i32
  }
}

</mosaic_0001>

<llo_original>
// kernel: tpu_custom_call.1
$region0: #{tpu_custom_call.1}
  #allocation0 [shape = 'u32[]', space=smem, size = 0x4, offset = 0x4, fixed_abs, tag = 'smem constant byte address 0x4 - core index']
  #allocation1 [shape = 'u32[144,128]{1,0:T(1,128)}', space=vmem, size = 0x12000, scoped, tag = 'internal scratch']
  %s0 = inlined_call_operand.vmem [shape: f32[16,32], index: 0, kind: input, shape index: {}]
  %s1 = inlined_call_operand.vmem [shape: s32[16,1], index: 1, kind: input, shape index: {}]
  %s2 = inlined_call_operand.vmem [shape: f32[16,1], index: 2, kind: input, shape index: {}]
  %s3 = inlined_call_operand.vmem [shape: f32[16,1], index: 3, kind: output, shape index: {}]
  %s4 = sld [smem:[#allocation0]]
  $region22: #{tpu_custom_call.1} parent=0
    _
  %s6 = ssub.s32 1, %s4
  %s7 = scalar_select 0, %s6, %s4
  // Predicated region
  $region2: #{tpu_custom_call.1} parent=0 // pred_check
    _
  $region3: #{tpu_custom_call.1} parent=0 // pred_check_branch
    %9 = sbr.rel (0) target = $region5
  $region4: #{tpu_custom_call.1} parent=0 // pred_region
    _
  $region5: #{tpu_custom_call.1} parent=0 // pred_fallthru
    _
  // Predicated region
  $region6: #{tpu_custom_call.1} parent=0 // pred_check
    _
  $region7: #{tpu_custom_call.1} parent=0 // pred_check_branch
    %11 = sbr.rel (0) target = $region9
  $region8: #{tpu_custom_call.1} parent=0 // pred_region
    _
  $region9: #{tpu_custom_call.1} parent=0 // pred_fallthru
    _
  // Predicated region
  $region10: #{tpu_custom_call.1} parent=0 // pred_check
    _
  $region11: #{tpu_custom_call.1} parent=0 // pred_check_branch
    %13 = sbr.rel (0) target = $region13
  $region12: #{tpu_custom_call.1} parent=0 // pred_region
    _
  $region13: #{tpu_custom_call.1} parent=0 // pred_fallthru
    _
  %v14 = vld [vmem:[%s0] sm:$0xff]
  %v15 = vld [vmem:[%s0 + $0x8] sm:$0xff]
  %v16 = vld [vmem:[%s1] sm:$0xff]
  %v17 = vld [vmem:[%s1 + $0x8] sm:$0xff]
  %v18 = vld [vmem:[%s2] sm:$0xff]
  %v19 = vld [vmem:[%s2 + $0x8] sm:$0xff]
  %v20 = vlaneseq
  %v21 = vand.u32 %v20, 127
  %22 = vset.pattern.permute.xlu0 0
  %23 = vperm.xlu0 %22, %v16
  %v24 = vpop.permute.xlu0 %23
  %25 = vset.pattern.permute.xlu0 0
  %26 = vperm.xlu0 %25, %v17
  %v27 = vpop.permute.xlu0 %26
  %vm28 = vcmp.eq.s32.totalorder %v21, %v24
  %vm29 = vcmp.eq.s32.totalorder %v21, %v27
  %v30 = vsel %vm28, 1, 0
  %v31 = vsel %vm29, 1, 0
  %v32 = vcvt.s32.f32 %v30
  %v33 = vcvt.s32.f32 %v31
  %v34 = vmul.f32 %v14, %v32
  %v35 = vmul.f32 %v15, %v33
  %vm36 = vcmask 261120
  %v37 = vsel %vm36, %v34, 0.0
  %38 = vadd.xlane.f32.xlu0 %v37
  %v39 = vpop.xlane.xlu0 %38
  %v40 = vsel %vm36, %v35, 0.0
  %41 = vadd.xlane.f32.xlu0 %v40
  %v42 = vpop.xlane.xlu0 %41
  %v43 = vmax.f32 %v39, 1e-08
  %v44 = vmax.f32 %v42, 1e-08
  %v45 = vmin.f32 %v43, 1.0
  %v46 = vmin.f32 %v44, 1.0
  %v47 = vlaneseq
  %v48 = vshrl.u32 %v47, 7
  %v49 = vadd.s32 %v48, 8
  %s50 = smul.u32 0, 16
  %v51 = vstv %s50
  %v52 = vadd.s32 %v48, %v51
  %v53 = vadd.s32 %v49, %v51
  %vm54 = vcmp.lt.s32.totalorder %v52, 16
  %vm55 = vcmp.lt.s32.totalorder %v53, 16
  %v56 = vlog2.pop %v45
  %v57 = vmul.f32 %v56, 0.6931472
  %v58 = vlog2.pop %v46
  %v59 = vmul.f32 %v58, 0.6931472
  %v60 = vsub.f32 0.0, %v57
  %v61 = vsub.f32 0.0, %v59
  %v62 = vmul.f32 %v60, %v18
  %v63 = vmul.f32 %v61, %v19
  %v64 = vsel %vm54, %v62, 0.0
  %v65 = vsel %vm55, %v63, 0.0
  %vm66 = vcmask 7168
  %67 = vst.msk [vmem:[%s3] sm:$0xff] %vm66, %v64
  %68 = vst.msk [vmem:[%s3 + $0x8] sm:$0xff] %vm66, %v65
  // Predicated region
  $region14: #{tpu_custom_call.1} parent=0 // pred_check
    _
  $region15: #{tpu_custom_call.1} parent=0 // pred_check_branch
    %70 = sbr.rel (0) target = $region17
  $region16: #{tpu_custom_call.1} parent=0 // pred_region
    _
  $region17: #{tpu_custom_call.1} parent=0 // pred_fallthru
    _
  // Predicated region
  $region18: #{tpu_custom_call.1} parent=0 // pred_check
    _
  $region19: #{tpu_custom_call.1} parent=0 // pred_check_branch
    %72 = sbr.rel (0) target = $region21
  $region20: #{tpu_custom_call.1} parent=0 // pred_region
    _
  $region21: #{tpu_custom_call.1} parent=0 // pred_fallthru
    _

</llo_original>
